<compile_context>
chip_gen: v7x
topology: tpu7x:2x2x1
jax: 0.10.0
libtpu: 0.0.40
codegen_flags: <defaults>
</compile_context>

<pallas_src>
import functools

import jax
import jax.numpy as jnp
from jax.experimental import pallas as pl
from jax.experimental.pallas import tpu as pltpu


_MAX_INT = 7.0   # 2**3 - 1
_MIN_INT = 0.0


def _ste_int3_asym_quant_kernel(x_ref, o_ref, *, groups_per_row, group):
    """One (row_tile, D) tile: per-group 3-bit asymmetric quant-dequant (row-independent)."""
    x_native = x_ref[...]                      # native dtype (f32 / bf16 / ...)
    tr = x_native.shape[0]

    # View the tile as (TR, G, group); per-group stats are lane reductions.
    # TODO(synk): for q_group_size < 128 a segmented (strided) reduce that keeps the
    # minor dim >= 128 lanes would avoid the narrow-minor VMEM relayout.
    xg = x_native.reshape(tr, groups_per_row, group) if groups_per_row > 1 else x_native

    # min/max are exact in the native dtype (bf16 halves the XLU reduce cost);
    # only the per-group scalars and the elementwise math run in f32.
    max_val = jnp.max(xg, axis=-1, keepdims=True).astype(jnp.float32)
    min_val = jnp.min(xg, axis=-1, keepdims=True).astype(jnp.float32)

    # Per-group scalars: keep exact divides (one per `group` elements, cheap) so
    # scales / zeros match the reference; torch.round == jnp.round (half-even).
    scales = jnp.maximum(max_val - min_val, 1e-5) / _MAX_INT
    zeros = jnp.clip(-jnp.round(min_val / scales), _MIN_INT, _MAX_INT)

    # Hoist the per-element divide to one exact reciprocal per group.
    inv_scales = 1.0 / scales
    v = xg.astype(jnp.float32) * inv_scales

    # Round.forward == round half away from zero: trunc(v + copysign(0.5, v)),
    # with copysign via a sign-bit OR (bitcasts free; avoids sign/abs/select chain).
    v_bits = pltpu.bitcast(v, jnp.uint32)
    signed_half = pltpu.bitcast(
        (v_bits & jnp.uint32(0x80000000)) | jnp.uint32(0x3F000000), jnp.float32)
    q = jnp.trunc(v + signed_half)

    # clip(q + zeros, 0, 7) - zeros == clip(q, -zeros, 7 - zeros): bounds are
    # per-group scalars, saving 2 VALU ops / element on the hot path.
    out = jnp.clip(q, -zeros, _MAX_INT - zeros) * scales

    if groups_per_row > 1:
        out = out.reshape(tr, groups_per_row * group)
    o_ref[...] = out.astype(o_ref.dtype)


def _round_up(n, m):
    return ((n + m - 1) // m) * m


def _vmem_capacity_bytes():
    try:
        return int(pltpu.get_tpu_info().vmem_capacity_bytes)
    except Exception:
        return 64 << 20   # conservative (v7x-sized) fallback


def _pick_row_tile(d, dtype_bytes, sublane):
    """Row tile for a bandwidth-bound elementwise kernel.

    Per-row VMEM cost = in+out double buffers (4 * dtype_bytes * d) plus ~4
    full-width f32 temporaries in the body (16 * d).  Keep the whole footprint
    around half of VMEM: ~4 MiB tiles on v7x, ~8 MiB on v5e/v6e.
    """
    vmem = _vmem_capacity_bytes()
    bytes_per_row = d * (4 * dtype_bytes + 16)
    rows = (vmem // 2) // max(1, bytes_per_row)
    rows = max(sublane, min(32768, (rows // sublane) * sublane))
    return int(rows)


def ste_int3_asym_quantize(x, q_group_size=128, row_tile=None):
    """Forward pass of SteInt3AsymQuantizer (3-bit asymmetric group quant-dequant).

    x: any shape with x.shape[-1] % q_group_size == 0 (q_group_size == -1 means
    one group per last-dim row).  Returns a tensor of the same shape/dtype.
    """
    org_shape = x.shape
    d = int(org_shape[-1])
    if q_group_size > 0:
        assert d % q_group_size == 0, (d, q_group_size)
        group = int(q_group_size)
    else:                          # q_group_size == -1: whole last dim is one group
        group = d
    groups_per_row = d // group

    # Flatten only the major dims: layout-preserving (last dim untouched), so no
    # HBM relayout copy is materialized around the pallas_call.
    x2 = x.reshape(-1, d)
    n_rows = x2.shape[0]

    dtype_bytes = jnp.dtype(x.dtype).itemsize
    sublane = max(8, 32 // max(1, dtype_bytes))     # f32 -> 8, bf16 -> 16, int8 -> 32

    if row_tile is None:
        row_tile = _pick_row_tile(d, dtype_bytes, sublane)
    row_tile = min(int(row_tile), _round_up(n_rows, sublane))
    row_tile = max(sublane, _round_up(row_tile, sublane))
    num_blocks = pl.cdiv(n_rows, row_tile)

    # With enough data, target >= 4 (even) grid steps so both v7x TensorCores
    # (single "parallel" grid axis) get prefetch/writeback overlap; no-op for
    # small inputs where per-step overhead would dominate.
    total_bytes = n_rows * d * dtype_bytes
    if num_blocks < 4 and total_bytes >= (4 << 20):
        row_tile = max(sublane, _round_up(pl.cdiv(n_rows, 4), sublane))
        num_blocks = pl.cdiv(n_rows, row_tile)
    elif num_blocks >= 4 and num_blocks % 2 == 1:
        row_tile = max(sublane, _round_up(pl.cdiv(n_rows, num_blocks + 1), sublane))
        num_blocks = pl.cdiv(n_rows, row_tile)

    # in+out double buffers + ~4 full-tile f32 temporaries, plus headroom.
    footprint = row_tile * d * (4 * dtype_bytes + 16)
    vmem_limit = int(max(32 << 20, footprint + (8 << 20)))

    kernel = functools.partial(_ste_int3_asym_quant_kernel,
                               groups_per_row=groups_per_row, group=group)

    out = pl.pallas_call(
        kernel,
        out_shape=jax.ShapeDtypeStruct((n_rows, d), x.dtype),
        grid_spec=pltpu.PrefetchScalarGridSpec(
            num_scalar_prefetch=0,
            grid=(num_blocks,),
            in_specs=[pl.BlockSpec((row_tile, d), lambda i: (i, 0))],
            out_specs=pl.BlockSpec((row_tile, d), lambda i: (i, 0)),
        ),
        compiler_params=pltpu.CompilerParams(
            dimension_semantics=("parallel",),
            vmem_limit_bytes=vmem_limit,
        ),
    )(x2)

    return out.reshape(org_shape)


# TODO(synk): only the forward (quant-dequant) is implemented; the STE identity
# backward of Round would be added via jax.custom_vjp around the wrapper.


def _reference(x, q_group_size=128):
    """Pure-JAX mirror of the PyTorch forward; also returns per-element quant step."""
    org_shape = x.shape
    group = q_group_size if q_group_size > 0 else org_shape[-1]
    x2 = x.reshape(-1, group).astype(jnp.float32)
    max_val = jnp.max(x2, axis=1, keepdims=True)
    min_val = jnp.min(x2, axis=1, keepdims=True)
    scales = jnp.maximum(max_val - min_val, 1e-5) / 7.0
    zeros = jnp.clip(-jnp.round(min_val / scales), 0.0, 7.0)
    v = x2 / scales
    q = jnp.sign(v) * jnp.floor(jnp.abs(v) + 0.5)
    out = (jnp.clip(q + zeros, 0.0, 7.0) - zeros) * scales
    out = out.reshape(org_shape).astype(x.dtype)
    step = jnp.broadcast_to(scales, x2.shape).reshape(org_shape)
    return out, step


def _check(name, y, x, q_group_size=128):
    r, step = _reference(x, q_group_size)
    assert y.shape == x.shape and y.dtype == x.dtype, name
    yf = y.astype(jnp.float32)
    rf = r.astype(jnp.float32)
    if bool(jnp.allclose(yf, rf, atol=1e-5, rtol=1e-5)):
        return
    # x * (1/s) vs x / s can shift an exact rounding tie by one quant code; bound
    # any such element by one quantization step and require the rest to match.
    err = jnp.abs(yf - rf)
    assert bool(jnp.all(err <= step * 1.0001 + 1e-6)), name
    assert float(jnp.mean((err <= 1e-5).astype(jnp.float32))) > 0.99, name


if __name__ == "__main__":
    key = jax.random.PRNGKey(0)
    k1, k2, k3 = jax.random.split(key, 3)

    # Small weight-like tensors, last dim divisible by q_group_size=128.
    x1 = jax.random.normal(k1, (2, 4, 128), dtype=jnp.float32)     # 1 group/row
    x2 = jax.random.normal(k2, (5, 256), dtype=jnp.float32)        # 2 groups/row, ragged rows
    x3 = jax.random.normal(k3, (3, 2, 128), dtype=jnp.float32).astype(jnp.bfloat16)

    y1 = jax.block_until_ready(ste_int3_asym_quantize(x1, q_group_size=128))
    y2 = jax.block_until_ready(ste_int3_asym_quantize(x2, q_group_size=128))
    y3 = jax.block_until_ready(ste_int3_asym_quantize(x3, q_group_size=128))

    _check("x1_f32", y1, x1, 128)
    _check("x2_f32_multi_group", y2, x2, 128)
    _check("x3_bf16", y3, x3, 128)
    print("KERNEL_OK")
</pallas_src>

<mosaic_0001>
module attributes {stable_mosaic.version = 11 : i64} {
  func.func @_ste_int3_asym_quant_kernel(%arg0: i32, %arg1: memref<8x128xf32, #tpu.memory_space<vmem>>, %arg2: memref<8x128xf32, #tpu.memory_space<vmem>>) attributes {dimension_semantics = [#tpu.dimension_semantics<parallel>], iteration_bounds = array<i64: 1>, scalar_prefetch = 0 : i64, scratch_operands = 0 : i64, tpu.core_type = #tpu.core_type<tc>, window_params = [{transform_indices = @transform_0, window_bounds = array<i64: 8, 128>}, {transform_indices = @transform_1, window_bounds = array<i64: 8, 128>}]} {
    %c0 = arith.constant 0 : index
    %c0_0 = arith.constant 0 : index
    %0 = vector.load %arg1[%c0, %c0_0] : memref<8x128xf32, #tpu.memory_space<vmem>>, vector<8x128xf32>
    %cst = arith.constant dense<0xFF800000> : vector<8xf32>
    %1 = vector.multi_reduction <maximumf>, %0, %cst [1] : vector<8x128xf32> to vector<8xf32>
    %2 = vector.shape_cast %1 : vector<8xf32> to vector<8x1xf32>
    %cst_1 = arith.constant dense<0x7F800000> : vector<8xf32>
    %3 = vector.multi_reduction <minimumf>, %0, %cst_1 [1] : vector<8x128xf32> to vector<8xf32>
    %4 = vector.shape_cast %3 : vector<8xf32> to vector<8x1xf32>
    %5 = arith.subf %2, %4 : vector<8x1xf32>
    %cst_2 = arith.constant 9.99999974E-6 : f32
    %6 = vector.broadcast %cst_2 : f32 to vector<8x1xf32>
    %7 = arith.maximumf %5, %6 : vector<8x1xf32>
    %cst_3 = arith.constant 7.000000e+00 : f32
    %8 = vector.broadcast %cst_3 : f32 to vector<8x1xf32>
    %9 = arith.divf %7, %8 : vector<8x1xf32>
    %10 = arith.divf %4, %9 : vector<8x1xf32>
    %11 = math.roundeven %10 : vector<8x1xf32>
    %cst_4 = arith.constant 0.000000e+00 : f32
    %12 = vector.broadcast %cst_4 : f32 to vector<8x1xf32>
    %13 = arith.subf %12, %11 : vector<8x1xf32>
    %cst_5 = arith.constant 0.000000e+00 : f32
    %cst_6 = arith.constant 7.000000e+00 : f32
    %14 = vector.broadcast %cst_5 : f32 to vector<8x1xf32>
    %15 = arith.maximumf %14, %13 : vector<8x1xf32>
    %16 = vector.broadcast %cst_6 : f32 to vector<8x1xf32>
    %17 = arith.minimumf %16, %15 : vector<8x1xf32>
    %cst_7 = arith.constant 1.000000e+00 : f32
    %18 = vector.broadcast %cst_7 : f32 to vector<8x1xf32>
    %19 = arith.divf %18, %9 : vector<8x1xf32>
    %20 = vector.broadcast %19 : vector<8x1xf32> to vector<8x128xf32>
    %21 = arith.mulf %0, %20 : vector<8x128xf32>
    %22 = tpu.bitcast %21 : vector<8x128xf32> -> vector<8x128xi32>
    %c-2147483648_i32 = arith.constant -2147483648 : i32
    %23 = vector.broadcast %c-2147483648_i32 : i32 to vector<8x128xi32>
    %24 = arith.andi %22, %23 : vector<8x128xi32>
    %c1056964608_i32 = arith.constant 1056964608 : i32
    %25 = vector.broadcast %c1056964608_i32 : i32 to vector<8x128xi32>
    %26 = arith.ori %24, %25 : vector<8x128xi32>
    %27 = tpu.bitcast %26 : vector<8x128xi32> -> vector<8x128xf32>
    %28 = arith.addf %21, %27 : vector<8x128xf32>
    %cst_8 = arith.constant 0.000000e+00 : f32
    %29 = vector.broadcast %cst_8 : f32 to vector<8x128xf32>
    %30 = arith.cmpf olt, %28, %29 : vector<8x128xf32>
    %31 = math.ceil %28 : vector<8x128xf32>
    %32 = math.floor %28 : vector<8x128xf32>
    %33 = arith.select %30, %31, %32 : vector<8x128xi1>, vector<8x128xf32>
    %cst_9 = arith.constant 0.000000e+00 : f32
    %34 = vector.broadcast %cst_9 : f32 to vector<8x1xf32>
    %35 = arith.subf %34, %17 : vector<8x1xf32>
    %cst_10 = arith.constant 7.000000e+00 : f32
    %36 = vector.broadcast %cst_10 : f32 to vector<8x1xf32>
    %37 = arith.subf %36, %17 : vector<8x1xf32>
    %38 = vector.broadcast %35 : vector<8x1xf32> to vector<8x128xf32>
    %39 = arith.maximumf %38, %33 : vector<8x128xf32>
    %40 = vector.broadcast %37 : vector<8x1xf32> to vector<8x128xf32>
    %41 = arith.minimumf %40, %39 : vector<8x128xf32>
    %42 = vector.broadcast %9 : vector<8x1xf32> to vector<8x128xf32>
    %43 = arith.mulf %41, %42 : vector<8x128xf32>
    %c0_11 = arith.constant 0 : index
    %c0_12 = arith.constant 0 : index
    %44 = vector.load %arg2[%c0_11, %c0_12] : memref<8x128xf32, #tpu.memory_space<vmem>>, vector<8x128xf32>
    tpu.vector_store %arg2[%c0_11, %c0_12], %43 {strides = array<i32>} : memref<8x128xf32, #tpu.memory_space<vmem>>, vector<8x128xf32>,
    return
  }
  func.func @transform_0(%arg0: i32) -> (i32, i32) {
    %c0_i32 = arith.constant 0 : i32
    %c0_i32_0 = arith.constant 0 : i32
    return %arg0, %c0_i32 : i32, i32
  }
  func.func @transform_1(%arg0: i32) -> (i32, i32) {
    %c0_i32 = arith.constant 0 : i32
    %c0_i32_0 = arith.constant 0 : i32
    return %arg0, %c0_i32 : i32, i32
  }
}

</mosaic_0001>

<llo_original>
// kernel: tpu_custom_call.1
$region0: #{tpu_custom_call.1}
  #allocation0 [shape = 'u32[]', space=smem, size = 0x4, offset = 0x4, fixed_abs, tag = 'smem constant byte address 0x4 - core index']
  #allocation1 [shape = 'u32[144,128]{1,0:T(1,128)}', space=vmem, size = 0x12000, scoped, tag = 'internal scratch']
  %s0 = inlined_call_operand.hbm [shape: f32[8,128], index: 0, kind: input, shape index: {}]
  %s1 = inlined_call_operand.hbm [shape: f32[8,128], index: 1, kind: output, shape index: {}]
  %s2 = sld [smem:[#allocation0]]
  $region18: #{tpu_custom_call.1} parent=0
    _
  %s4 = ssub.s32 1, %s2
  %s5 = scalar_select 0, %s4, %s2
  $region1: #{tpu_custom_call.1} parent=0
    #allocation2 [shape = 'u8[4096]{0}', space=vmem, size = 0x1000, scoped, tag = 'input window, operand 0, single buffered']
    #allocation3 [shape = 's32[1]{0}', space=sflag, size = 0x4, scoped, tag = 'scoped memory for tpu_custom_call.1']
    #allocation4 [shape = 's32[1]{0}', space=sflag, size = 0x4, scoped, tag = 'scoped memory for tpu_custom_call.1']
    #allocation5 [shape = 'u8[4096]{0}', space=vmem, size = 0x1000, scoped, tag = 'output window, operand 0, single buffered']
    %6 = vsyncpa [#allocation3], 0
    %7 = vsyncpa [#allocation4], 0
    // Predicated region
    $region2: #{tpu_custom_call.1} parent=1 // pred_check
      _
    $region3: #{tpu_custom_call.1} parent=1 // pred_check_branch
      %9 = sbr.rel (0) target = $region5
    $region4: #{tpu_custom_call.1} parent=1 // pred_region
      %s11 = ssub.s32 128, 128
      %12 = vsyncadd [#allocation3], %s11
      %s14 = sshll.u32 [#allocation2], 4
      %s15 = int_to_ptr.vmem [resolvable:$true] %s14
      %17 = dma.hbm_to_vmem [thread:$0]  %s0, 128, %s15, [#allocation3]
    $region5: #{tpu_custom_call.1} parent=1 // pred_fallthru
      _
    // Predicated region
    $region6: #{tpu_custom_call.1} parent=1 // pred_check
      _
    $region7: #{tpu_custom_call.1} parent=1 // pred_check_branch
      %19 = sbr.rel (0) target = $region9
    $region8: #{tpu_custom_call.1} parent=1 // pred_region
      %20 = dma.done [#allocation3], 128
    $region9: #{tpu_custom_call.1} parent=1 // pred_fallthru
      _
    %v21 = vld [vmem:[#allocation2] sm:$0xff]
    %22 = vmax.xlane.f32.xlu0 %v21
    %v23 = vpop.xlane.xlu0 %22
    %24 = vmin.xlane.f32.xlu0 %v21
    %v25 = vpop.xlane.xlu0 %24
    %v26 = vsub.f32 %v23, %v25
    %v27 = vmax.f32 %v26, 1e-05
    %v28 = vrcp.pop 7.0
    %v29 = vmul.f32 %v27, %v28
    %v30 = vrcp.pop %v29
    %v31 = vmul.f32 %v25, %v30
    %v32 = vround.ne.pseudo %v31
    %v33 = vsub.f32 0.0, %v32
    %v34 = vmax.f32 %v33, 0.0
    %v35 = vmin.f32 %v34, 7.0
    %v36 = vmul.f32 1.0, %v30
    %v37 = vmul.f32 %v21, %v36
    %v39 = vand.u32 %v37, 2147483648
    %v40 = vor.u32 %v39, 1056964608
    %v42 = vadd.f32 %v37, %v40
    %vm43 = vcmp.lt.f32.partialorder %v42, 0.0
    %v44 = vceil.f32 %v42
    %v45 = vfloor.f32 %v42
    %v46 = vsel %vm43, %v44, %v45
    %v47 = vsub.f32 0.0, %v35
    %v48 = vsub.f32 7.0, %v35
    %v49 = vmax.f32 %v47, %v46
    %v50 = vmin.f32 %v48, %v49
    %v51 = vmul.f32 %v50, %v29
    %52 = vst [vmem:[#allocation5] sm:$0xff] %v51
    // Predicated region
    $region10: #{tpu_custom_call.1} parent=1 // pred_check
      _
    $region11: #{tpu_custom_call.1} parent=1 // pred_check_branch
      %54 = sbr.rel (0) target = $region13
    $region12: #{tpu_custom_call.1} parent=1 // pred_region
      %s56 = ssub.s32 128, 128
      %57 = vsyncadd [#allocation4], %s56
      %s59 = sshll.u32 [#allocation5], 4
      %s60 = int_to_ptr.vmem [resolvable:$true] %s59
      %62 = dma.vmem_to_hbm [thread:$0]  %s60, 128, %s1, [#allocation4]
    $region13: #{tpu_custom_call.1} parent=1 // pred_fallthru
      _
    // Predicated region
    $region14: #{tpu_custom_call.1} parent=1 // pred_check
      _
    $region15: #{tpu_custom_call.1} parent=1 // pred_check_branch
      %64 = sbr.rel (0) target = $region17
    $region16: #{tpu_custom_call.1} parent=1 // pred_region
      %65 = dma.done [#allocation4], 128
    $region17: #{tpu_custom_call.1} parent=1 // pred_fallthru
      _
    %66 = vsyncpa [#allocation3], 1
    %67 = vsyncpa [#allocation4], 1

</llo_original>
